<compile_context>
chip_gen: v7x
topology: tpu7x:2x2x1
jax: 0.10.0
libtpu: 0.0.40
codegen_flags: <defaults>
</compile_context>

<pallas_src>
import functools

import jax
import jax.numpy as jnp
from jax.experimental import pallas as pl
from jax.experimental.pallas import tpu as pltpu


def _ctrnn_chunk_kernel(pre_ref, w_hh_ref, rnn_out_ref, h_scratch,
                        *, alpha, chunk):
    """One grid step = `chunk` CTRNN timesteps.

    pre_ref:     (chunk, batch, hidden)  precomputed x@W_in + b_in + b_hh
    w_hh_ref:    (hidden, hidden)        recurrent weight, (in, out) layout
    rnn_out_ref: (chunk, batch, hidden)  hidden state per timestep (output)
    h_scratch:   (batch, hidden)         persistent hidden state across chunks
    """
    @pl.when(pl.program_id(0) == 0)
    def _():
        h_scratch[...] = jnp.zeros_like(h_scratch)

    w_hh = w_hh_ref[...]          # hoisted load, resident in vregs across steps
    one_minus_alpha = 1.0 - alpha

    def step(t, h):
        pre = pre_ref[t] + jnp.dot(h, w_hh,
                                   preferred_element_type=jnp.float32)
        h_new = jnp.tanh(pre)     # EUP; off the VALU critical path
        h = h * one_minus_alpha + alpha * h_new   # matches reference exactly
        rnn_out_ref[t] = h.astype(rnn_out_ref.dtype)
        return h

    # Fully unrolled: trip count is static, so indices become concrete and the
    # LLO scheduler sees the whole chunk at once.
    h_scratch[...] = jax.lax.fori_loop(0, chunk, step, h_scratch[...],
                                       unroll=True)


def _pick_time_chunk(seq_len, batch, hidden_size,
                     vmem_budget_bytes=8 * 1024 * 1024):
    """Timesteps per grid iteration.

    Budget: double-buffered pre_in chunk + double-buffered output chunk (f32).
    Conservative enough for v7x's 64 MiB VMEM (and trivially for v5e/v6e).
    Also capped so the unrolled inner loop stays a reasonable code size.
    """
    per_step_bytes = 4 * batch * hidden_size * 4   # 2x in + 2x out buffers, f32
    chunk = max(1, vmem_budget_bytes // max(per_step_bytes, 1))
    chunk = min(chunk, seq_len, 16)
    return int(chunk)


def rnn_net_forward(x, params, *, alpha, time_chunk=None):
    """x: (seq_len, batch, input_size) float32.  Returns (out, rnn_output)."""
    seq_len, batch, input_size = x.shape
    w_in, b_in, w_hh, b_hh, w_fc, b_fc = params
    hidden_size = w_hh.shape[1]
    output_size = w_fc.shape[1]

    # --- Hoisted input projection: one dense matmul over all timesteps. ---
    # Fold the two biases into one.
    bias = (b_in + b_hh).reshape(1, hidden_size)
    pre_in = jnp.dot(x.reshape(seq_len * batch, input_size).astype(jnp.float32),
                     w_in.astype(jnp.float32),
                     preferred_element_type=jnp.float32) + bias
    pre_in = pre_in.reshape(seq_len, batch, hidden_size)

    # --- Chunk the time axis. ---
    if time_chunk is None:
        time_chunk = _pick_time_chunk(seq_len, batch, hidden_size)
    num_chunks = pl.cdiv(seq_len, time_chunk)
    padded_len = num_chunks * time_chunk
    if padded_len != seq_len:
        # Padded trailing timesteps only write output rows that are sliced off
        # below; they cannot corrupt the real outputs.
        pre_in = jnp.pad(pre_in,
                         ((0, padded_len - seq_len), (0, 0), (0, 0)))

    kernel = functools.partial(_ctrnn_chunk_kernel,
                               alpha=float(alpha), chunk=int(time_chunk))
    # NOTE: alpha is baked in as a static Python float; if it ever becomes a
    # traced value it must be passed as an SMEM scalar instead.

    rnn_out = pl.pallas_call(
        kernel,
        out_shape=jax.ShapeDtypeStruct((padded_len, batch, hidden_size),
                                       jnp.float32),
        grid_spec=pltpu.PrefetchScalarGridSpec(
            num_scalar_prefetch=0,
            grid=(num_chunks,),
            in_specs=[
                pl.BlockSpec((time_chunk, batch, hidden_size),
                             lambda c: (c, 0, 0)),              # pre_in chunk
                pl.BlockSpec((hidden_size, hidden_size),
                             lambda c: (0, 0)),                 # W_hh (resident)
            ],
            out_specs=pl.BlockSpec((time_chunk, batch, hidden_size),
                                   lambda c: (c, 0, 0)),        # rnn_out chunk
            scratch_shapes=[pltpu.VMEM((batch, hidden_size), jnp.float32)],
        ),
        compiler_params=pltpu.CompilerParams(
            dimension_semantics=("arbitrary",)),   # time recurrence is serial
    )(pre_in, w_hh.astype(jnp.float32))

    rnn_out = rnn_out[:seq_len]

    # --- Hoisted readout: one dense matmul over all timesteps. ---
    out = jnp.dot(rnn_out.reshape(seq_len * batch, hidden_size),
                  w_fc.astype(jnp.float32),
                  preferred_element_type=jnp.float32) + b_fc.reshape(1, output_size)
    out = out.reshape(seq_len, batch, output_size)
    return out, rnn_out


def make_params(key, input_size, hidden_size, output_size):
    """Deterministic init mimicking nn.Linear default (U[-1/sqrt(fan_in), +])."""
    ks = jax.random.split(key, 6)

    def linear(kw, kb, fan_in, fan_out):
        bound = 1.0 / jnp.sqrt(fan_in)
        # stored as (in_features, out_features) == PyTorch weight.T
        w = jax.random.uniform(kw, (fan_in, fan_out), jnp.float32, -bound, bound)
        b = jax.random.uniform(kb, (1, fan_out), jnp.float32, -bound, bound)
        return w, b

    w_in, b_in = linear(ks[0], ks[1], input_size, hidden_size)
    w_hh, b_hh = linear(ks[2], ks[3], hidden_size, hidden_size)
    w_fc, b_fc = linear(ks[4], ks[5], hidden_size, output_size)
    return (w_in, b_in, w_hh, b_hh, w_fc, b_fc)


def reference_forward(x, params, *, alpha):
    """Pure-JAX reference of RNNNet.forward for the correctness check."""
    w_in, b_in, w_hh, b_hh, w_fc, b_fc = params
    batch = x.shape[1]
    hidden_size = w_in.shape[1]

    def step(h, x_t):
        h_new = jnp.tanh(x_t @ w_in + b_in + h @ w_hh + b_hh)
        h = h * (1.0 - alpha) + alpha * h_new
        return h, h

    h0 = jnp.zeros((batch, hidden_size), jnp.float32)
    _, rnn_out = jax.lax.scan(step, h0, x)
    out = rnn_out @ w_fc + b_fc
    return out, rnn_out


if __name__ == "__main__":
    # Small shapes consistent with the module's forward:
    seq_len, batch, input_size = 8, 2, 2
    hidden_size, output_size = 32, 1
    dt, tau = 0.1, 1.0
    alpha = dt / tau

    key = jax.random.PRNGKey(0)
    kx, kp = jax.random.split(key)
    x = jax.random.normal(kx, (seq_len, batch, input_size), jnp.float32)
    params = make_params(kp, input_size, hidden_size, output_size)

    out, rnn_out = rnn_net_forward(x, params, alpha=alpha)
    jax.block_until_ready((out, rnn_out))

    out_ref, rnn_ref = reference_forward(x, params, alpha=alpha)
    assert out.shape == (seq_len, batch, output_size)
    assert rnn_out.shape == (seq_len, batch, hidden_size)
    assert jnp.allclose(out, out_ref, atol=1e-5, rtol=1e-5)
    assert jnp.allclose(rnn_out, rnn_ref, atol=1e-5, rtol=1e-5)

    print("KERNEL_OK")
</pallas_src>

<mosaic_0001>
module attributes {stable_mosaic.version = 11 : i64} {
  func.func @_ctrnn_chunk_kernel(%arg0: i32, %arg1: memref<8x2x32xf32, #tpu.memory_space<vmem>>, %arg2: memref<32x32xf32, #tpu.memory_space<vmem>>, %arg3: memref<8x2x32xf32, #tpu.memory_space<vmem>>, %arg4: memref<2x32xf32, #tpu.memory_space<vmem>>) attributes {dimension_semantics = [#tpu.dimension_semantics<arbitrary>], iteration_bounds = array<i64: 1>, scalar_prefetch = 0 : i64, scratch_operands = 1 : i64, tpu.core_type = #tpu.core_type<tc>, window_params = [{transform_indices = @transform_0, window_bounds = array<i64: 8, 2, 32>}, {pipeline_mode = #tpu.pipeline_mode<synchronous>, transform_indices = @transform_1, window_bounds = array<i64: 32, 32>}, {transform_indices = @transform_2, window_bounds = array<i64: 8, 2, 32>}]} {
    %c0_i32 = arith.constant 0 : i32
    %0 = arith.cmpi eq, %arg0, %c0_i32 : i32
    %1 = arith.extui %0 : i1 to i32
    %c0_i32_0 = arith.constant 0 : i32
    %2 = arith.cmpi ne, %1, %c0_i32_0 : i32
    scf.if %2 {
      %cst_62 = arith.constant 0.000000e+00 : f32
      %126 = vector.broadcast %cst_62 : f32 to vector<2x32xf32>
      %c0_63 = arith.constant 0 : index
      %c0_64 = arith.constant 0 : index
      %127 = vector.load %arg4[%c0_63, %c0_64] : memref<2x32xf32, #tpu.memory_space<vmem>>, vector<2x32xf32>
      tpu.vector_store %arg4[%c0_63, %c0_64], %126 {strides = array<i32>} : memref<2x32xf32, #tpu.memory_space<vmem>>, vector<2x32xf32>,
    } else {
    }
    %c0 = arith.constant 0 : index
    %c0_1 = arith.constant 0 : index
    %3 = vector.load %arg2[%c0, %c0_1] : memref<32x32xf32, #tpu.memory_space<vmem>>, vector<32x32xf32>
    %c0_2 = arith.constant 0 : index
    %c0_3 = arith.constant 0 : index
    %4 = vector.load %arg4[%c0_2, %c0_3] : memref<2x32xf32, #tpu.memory_space<vmem>>, vector<2x32xf32>
    %c0_i32_4 = arith.constant 0 : i32
    %5 = arith.index_cast %c0_i32_4 : i32 to index
    %c0_5 = arith.constant 0 : index
    %c0_6 = arith.constant 0 : index
    %6 = vector.load %arg1[%5, %c0_5, %c0_6] : memref<8x2x32xf32, #tpu.memory_space<vmem>>, vector<1x2x32xf32>
    %7 = vector.shape_cast %6 : vector<1x2x32xf32> to vector<2x32xf32>
    %cst = arith.constant dense<0.000000e+00> : vector<2x32xf32>
    %8 = tpu.matmul %4, %3, %cst {dimension_numbers = #tpu.dot_dimension_numbers<[1], [0], [0], [1], [0, 0, 1, 1], [], []>} : vector<2x32xf32>, vector<32x32xf32>, vector<2x32xf32> -> vector<2x32xf32>
    %9 = arith.addf %7, %8 : vector<2x32xf32>
    %10 = math.tanh %9 : vector<2x32xf32>
    %cst_7 = arith.constant 0.899999976 : f32
    %11 = vector.broadcast %cst_7 : f32 to vector<2x32xf32>
    %12 = arith.mulf %4, %11 : vector<2x32xf32>
    %cst_8 = arith.constant 1.000000e-01 : f32
    %13 = vector.broadcast %cst_8 : f32 to vector<2x32xf32>
    %14 = arith.mulf %13, %10 : vector<2x32xf32>
    %15 = arith.addf %12, %14 : vector<2x32xf32>
    %16 = arith.index_cast %c0_i32_4 : i32 to index
    %c0_9 = arith.constant 0 : index
    %c0_10 = arith.constant 0 : index
    %17 = vector.load %arg3[%16, %c0_9, %c0_10] : memref<8x2x32xf32, #tpu.memory_space<vmem>>, vector<1x2x32xf32>
    %18 = vector.shape_cast %17 : vector<1x2x32xf32> to vector<2x32xf32>
    %19 = vector.shape_cast %15 : vector<2x32xf32> to vector<1x2x32xf32>
    tpu.vector_store %arg3[%16, %c0_9, %c0_10], %19 {strides = array<i32>} : memref<8x2x32xf32, #tpu.memory_space<vmem>>, vector<1x2x32xf32>,
    %c1_i32 = arith.constant 1 : i32
    %20 = arith.index_cast %c1_i32 : i32 to index
    %c0_11 = arith.constant 0 : index
    %c0_12 = arith.constant 0 : index
    %21 = vector.load %arg1[%20, %c0_11, %c0_12] : memref<8x2x32xf32, #tpu.memory_space<vmem>>, vector<1x2x32xf32>
    %22 = vector.shape_cast %21 : vector<1x2x32xf32> to vector<2x32xf32>
    %cst_13 = arith.constant dense<0.000000e+00> : vector<2x32xf32>
    %23 = tpu.matmul %15, %3, %cst_13 {dimension_numbers = #tpu.dot_dimension_numbers<[1], [0], [0], [1], [0, 0, 1, 1], [], []>} : vector<2x32xf32>, vector<32x32xf32>, vector<2x32xf32> -> vector<2x32xf32>
    %24 = arith.addf %22, %23 : vector<2x32xf32>
    %25 = math.tanh %24 : vector<2x32xf32>
    %cst_14 = arith.constant 0.899999976 : f32
    %26 = vector.broadcast %cst_14 : f32 to vector<2x32xf32>
    %27 = arith.mulf %15, %26 : vector<2x32xf32>
    %cst_15 = arith.constant 1.000000e-01 : f32
    %28 = vector.broadcast %cst_15 : f32 to vector<2x32xf32>
    %29 = arith.mulf %28, %25 : vector<2x32xf32>
    %30 = arith.addf %27, %29 : vector<2x32xf32>
    %31 = arith.index_cast %c1_i32 : i32 to index
    %c0_16 = arith.constant 0 : index
    %c0_17 = arith.constant 0 : index
    %32 = vector.load %arg3[%31, %c0_16, %c0_17] : memref<8x2x32xf32, #tpu.memory_space<vmem>>, vector<1x2x32xf32>
    %33 = vector.shape_cast %32 : vector<1x2x32xf32> to vector<2x32xf32>
    %34 = vector.shape_cast %30 : vector<2x32xf32> to vector<1x2x32xf32>
    tpu.vector_store %arg3[%31, %c0_16, %c0_17], %34 {strides = array<i32>} : memref<8x2x32xf32, #tpu.memory_space<vmem>>, vector<1x2x32xf32>,
    %c2_i32 = arith.constant 2 : i32
    %35 = arith.index_cast %c2_i32 : i32 to index
    %c0_18 = arith.constant 0 : index
    %c0_19 = arith.constant 0 : index
    %36 = vector.load %arg1[%35, %c0_18, %c0_19] : memref<8x2x32xf32, #tpu.memory_space<vmem>>, vector<1x2x32xf32>
    %37 = vector.shape_cast %36 : vector<1x2x32xf32> to vector<2x32xf32>
    %cst_20 = arith.constant dense<0.000000e+00> : vector<2x32xf32>
    %38 = tpu.matmul %30, %3, %cst_20 {dimension_numbers = #tpu.dot_dimension_numbers<[1], [0], [0], [1], [0, 0, 1, 1], [], []>} : vector<2x32xf32>, vector<32x32xf32>, vector<2x32xf32> -> vector<2x32xf32>
    %39 = arith.addf %37, %38 : vector<2x32xf32>
    %40 = math.tanh %39 : vector<2x32xf32>
    %cst_21 = arith.constant 0.899999976 : f32
    %41 = vector.broadcast %cst_21 : f32 to vector<2x32xf32>
    %42 = arith.mulf %30, %41 : vector<2x32xf32>
    %cst_22 = arith.constant 1.000000e-01 : f32
    %43 = vector.broadcast %cst_22 : f32 to vector<2x32xf32>
    %44 = arith.mulf %43, %40 : vector<2x32xf32>
    %45 = arith.addf %42, %44 : vector<2x32xf32>
    %46 = arith.index_cast %c2_i32 : i32 to index
    %c0_23 = arith.constant 0 : index
    %c0_24 = arith.constant 0 : index
    %47 = vector.load %arg3[%46, %c0_23, %c0_24] : memref<8x2x32xf32, #tpu.memory_space<vmem>>, vector<1x2x32xf32>
    %48 = vector.shape_cast %47 : vector<1x2x32xf32> to vector<2x32xf32>
    %49 = vector.shape_cast %45 : vector<2x32xf32> to vector<1x2x32xf32>
    tpu.vector_store %arg3[%46, %c0_23, %c0_24], %49 {strides = array<i32>} : memref<8x2x32xf32, #tpu.memory_space<vmem>>, vector<1x2x32xf32>,
    %c3_i32 = arith.constant 3 : i32
    %50 = arith.index_cast %c3_i32 : i32 to index
    %c0_25 = arith.constant 0 : index
    %c0_26 = arith.constant 0 : index
    %51 = vector.load %arg1[%50, %c0_25, %c0_26] : memref<8x2x32xf32, #tpu.memory_space<vmem>>, vector<1x2x32xf32>
    %52 = vector.shape_cast %51 : vector<1x2x32xf32> to vector<2x32xf32>
    %cst_27 = arith.constant dense<0.000000e+00> : vector<2x32xf32>
    %53 = tpu.matmul %45, %3, %cst_27 {dimension_numbers = #tpu.dot_dimension_numbers<[1], [0], [0], [1], [0, 0, 1, 1], [], []>} : vector<2x32xf32>, vector<32x32xf32>, vector<2x32xf32> -> vector<2x32xf32>
    %54 = arith.addf %52, %53 : vector<2x32xf32>
    %55 = math.tanh %54 : vector<2x32xf32>
    %cst_28 = arith.constant 0.899999976 : f32
    %56 = vector.broadcast %cst_28 : f32 to vector<2x32xf32>
    %57 = arith.mulf %45, %56 : vector<2x32xf32>
    %cst_29 = arith.constant 1.000000e-01 : f32
    %58 = vector.broadcast %cst_29 : f32 to vector<2x32xf32>
    %59 = arith.mulf %58, %55 : vector<2x32xf32>
    %60 = arith.addf %57, %59 : vector<2x32xf32>
    %61 = arith.index_cast %c3_i32 : i32 to index
    %c0_30 = arith.constant 0 : index
    %c0_31 = arith.constant 0 : index
    %62 = vector.load %arg3[%61, %c0_30, %c0_31] : memref<8x2x32xf32, #tpu.memory_space<vmem>>, vector<1x2x32xf32>
    %63 = vector.shape_cast %62 : vector<1x2x32xf32> to vector<2x32xf32>
    %64 = vector.shape_cast %60 : vector<2x32xf32> to vector<1x2x32xf32>
    tpu.vector_store %arg3[%61, %c0_30, %c0_31], %64 {strides = array<i32>} : memref<8x2x32xf32, #tpu.memory_space<vmem>>, vector<1x2x32xf32>,
    %c4_i32 = arith.constant 4 : i32
    %65 = arith.index_cast %c4_i32 : i32 to index
    %c0_32 = arith.constant 0 : index
    %c0_33 = arith.constant 0 : index
    %66 = vector.load %arg1[%65, %c0_32, %c0_33] : memref<8x2x32xf32, #tpu.memory_space<vmem>>, vector<1x2x32xf32>
    %67 = vector.shape_cast %66 : vector<1x2x32xf32> to vector<2x32xf32>
    %cst_34 = arith.constant dense<0.000000e+00> : vector<2x32xf32>
    %68 = tpu.matmul %60, %3, %cst_34 {dimension_numbers = #tpu.dot_dimension_numbers<[1], [0], [0], [1], [0, 0, 1, 1], [], []>} : vector<2x32xf32>, vector<32x32xf32>, vector<2x32xf32> -> vector<2x32xf32>
    %69 = arith.addf %67, %68 : vector<2x32xf32>
    %70 = math.tanh %69 : vector<2x32xf32>
    %cst_35 = arith.constant 0.899999976 : f32
    %71 = vector.broadcast %cst_35 : f32 to vector<2x32xf32>
    %72 = arith.mulf %60, %71 : vector<2x32xf32>
    %cst_36 = arith.constant 1.000000e-01 : f32
    %73 = vector.broadcast %cst_36 : f32 to vector<2x32xf32>
    %74 = arith.mulf %73, %70 : vector<2x32xf32>
    %75 = arith.addf %72, %74 : vector<2x32xf32>
    %76 = arith.index_cast %c4_i32 : i32 to index
    %c0_37 = arith.constant 0 : index
    %c0_38 = arith.constant 0 : index
    %77 = vector.load %arg3[%76, %c0_37, %c0_38] : memref<8x2x32xf32, #tpu.memory_space<vmem>>, vector<1x2x32xf32>
    %78 = vector.shape_cast %77 : vector<1x2x32xf32> to vector<2x32xf32>
    %79 = vector.shape_cast %75 : vector<2x32xf32> to vector<1x2x32xf32>
    tpu.vector_store %arg3[%76, %c0_37, %c0_38], %79 {strides = array<i32>} : memref<8x2x32xf32, #tpu.memory_space<vmem>>, vector<1x2x32xf32>,
    %c5_i32 = arith.constant 5 : i32
    %80 = arith.index_cast %c5_i32 : i32 to index
    %c0_39 = arith.constant 0 : index
    %c0_40 = arith.constant 0 : index
    %81 = vector.load %arg1[%80, %c0_39, %c0_40] : memref<8x2x32xf32, #tpu.memory_space<vmem>>, vector<1x2x32xf32>
    %82 = vector.shape_cast %81 : vector<1x2x32xf32> to vector<2x32xf32>
    %cst_41 = arith.constant dense<0.000000e+00> : vector<2x32xf32>
    %83 = tpu.matmul %75, %3, %cst_41 {dimension_numbers = #tpu.dot_dimension_numbers<[1], [0], [0], [1], [0, 0, 1, 1], [], []>} : vector<2x32xf32>, vector<32x32xf32>, vector<2x32xf32> -> vector<2x32xf32>
    %84 = arith.addf %82, %83 : vector<2x32xf32>
    %85 = math.tanh %84 : vector<2x32xf32>
    %cst_42 = arith.constant 0.899999976 : f32
    %86 = vector.broadcast %cst_42 : f32 to vector<2x32xf32>
    %87 = arith.mulf %75, %86 : vector<2x32xf32>
    %cst_43 = arith.constant 1.000000e-01 : f32
    %88 = vector.broadcast %cst_43 : f32 to vector<2x32xf32>
    %89 = arith.mulf %88, %85 : vector<2x32xf32>
    %90 = arith.addf %87, %89 : vector<2x32xf32>
    %91 = arith.index_cast %c5_i32 : i32 to index
    %c0_44 = arith.constant 0 : index
    %c0_45 = arith.constant 0 : index
    %92 = vector.load %arg3[%91, %c0_44, %c0_45] : memref<8x2x32xf32, #tpu.memory_space<vmem>>, vector<1x2x32xf32>
    %93 = vector.shape_cast %92 : vector<1x2x32xf32> to vector<2x32xf32>
    %94 = vector.shape_cast %90 : vector<2x32xf32> to vector<1x2x32xf32>
    tpu.vector_store %arg3[%91, %c0_44, %c0_45], %94 {strides = array<i32>} : memref<8x2x32xf32, #tpu.memory_space<vmem>>, vector<1x2x32xf32>,
    %c6_i32 = arith.constant 6 : i32
    %95 = arith.index_cast %c6_i32 : i32 to index
    %c0_46 = arith.constant 0 : index
    %c0_47 = arith.constant 0 : index
    %96 = vector.load %arg1[%95, %c0_46, %c0_47] : memref<8x2x32xf32, #tpu.memory_space<vmem>>, vector<1x2x32xf32>
    %97 = vector.shape_cast %96 : vector<1x2x32xf32> to vector<2x32xf32>
    %cst_48 = arith.constant dense<0.000000e+00> : vector<2x32xf32>
    %98 = tpu.matmul %90, %3, %cst_48 {dimension_numbers = #tpu.dot_dimension_numbers<[1], [0], [0], [1], [0, 0, 1, 1], [], []>} : vector<2x32xf32>, vector<32x32xf32>, vector<2x32xf32> -> vector<2x32xf32>
    %99 = arith.addf %97, %98 : vector<2x32xf32>
    %100 = math.tanh %99 : vector<2x32xf32>
    %cst_49 = arith.constant 0.899999976 : f32
    %101 = vector.broadcast %cst_49 : f32 to vector<2x32xf32>
    %102 = arith.mulf %90, %101 : vector<2x32xf32>
    %cst_50 = arith.constant 1.000000e-01 : f32
    %103 = vector.broadcast %cst_50 : f32 to vector<2x32xf32>
    %104 = arith.mulf %103, %100 : vector<2x32xf32>
    %105 = arith.addf %102, %104 : vector<2x32xf32>
    %106 = arith.index_cast %c6_i32 : i32 to index
    %c0_51 = arith.constant 0 : index
    %c0_52 = arith.constant 0 : index
    %107 = vector.load %arg3[%106, %c0_51, %c0_52] : memref<8x2x32xf32, #tpu.memory_space<vmem>>, vector<1x2x32xf32>
    %108 = vector.shape_cast %107 : vector<1x2x32xf32> to vector<2x32xf32>
    %109 = vector.shape_cast %105 : vector<2x32xf32> to vector<1x2x32xf32>
    tpu.vector_store %arg3[%106, %c0_51, %c0_52], %109 {strides = array<i32>} : memref<8x2x32xf32, #tpu.memory_space<vmem>>, vector<1x2x32xf32>,
    %c7_i32 = arith.constant 7 : i32
    %110 = arith.index_cast %c7_i32 : i32 to index
    %c0_53 = arith.constant 0 : index
    %c0_54 = arith.constant 0 : index
    %111 = vector.load %arg1[%110, %c0_53, %c0_54] : memref<8x2x32xf32, #tpu.memory_space<vmem>>, vector<1x2x32xf32>
    %112 = vector.shape_cast %111 : vector<1x2x32xf32> to vector<2x32xf32>
    %cst_55 = arith.constant dense<0.000000e+00> : vector<2x32xf32>
    %113 = tpu.matmul %105, %3, %cst_55 {dimension_numbers = #tpu.dot_dimension_numbers<[1], [0], [0], [1], [0, 0, 1, 1], [], []>} : vector<2x32xf32>, vector<32x32xf32>, vector<2x32xf32> -> vector<2x32xf32>
    %114 = arith.addf %112, %113 : vector<2x32xf32>
    %115 = math.tanh %114 : vector<2x32xf32>
    %cst_56 = arith.constant 0.899999976 : f32
    %116 = vector.broadcast %cst_56 : f32 to vector<2x32xf32>
    %117 = arith.mulf %105, %116 : vector<2x32xf32>
    %cst_57 = arith.constant 1.000000e-01 : f32
    %118 = vector.broadcast %cst_57 : f32 to vector<2x32xf32>
    %119 = arith.mulf %118, %115 : vector<2x32xf32>
    %120 = arith.addf %117, %119 : vector<2x32xf32>
    %121 = arith.index_cast %c7_i32 : i32 to index
    %c0_58 = arith.constant 0 : index
    %c0_59 = arith.constant 0 : index
    %122 = vector.load %arg3[%121, %c0_58, %c0_59] : memref<8x2x32xf32, #tpu.memory_space<vmem>>, vector<1x2x32xf32>
    %123 = vector.shape_cast %122 : vector<1x2x32xf32> to vector<2x32xf32>
    %124 = vector.shape_cast %120 : vector<2x32xf32> to vector<1x2x32xf32>
    tpu.vector_store %arg3[%121, %c0_58, %c0_59], %124 {strides = array<i32>} : memref<8x2x32xf32, #tpu.memory_space<vmem>>, vector<1x2x32xf32>,
    %c8_i32 = arith.constant 8 : i32
    %c0_60 = arith.constant 0 : index
    %c0_61 = arith.constant 0 : index
    %125 = vector.load %arg4[%c0_60, %c0_61] : memref<2x32xf32, #tpu.memory_space<vmem>>, vector<2x32xf32>
    tpu.vector_store %arg4[%c0_60, %c0_61], %120 {strides = array<i32>} : memref<2x32xf32, #tpu.memory_space<vmem>>, vector<2x32xf32>,
    return
  }
  func.func @transform_0(%arg0: i32) -> (i32, i32, i32) {
    %c0_i32 = arith.constant 0 : i32
    %c0_i32_0 = arith.constant 0 : i32
    %c0_i32_1 = arith.constant 0 : i32
    return %arg0, %c0_i32, %c0_i32_0 : i32, i32, i32
  }
  func.func @transform_1(%arg0: i32) -> (i32, i32) {
    %c0_i32 = arith.constant 0 : i32
    %c0_i32_0 = arith.constant 0 : i32
    %c0_i32_1 = arith.constant 0 : i32
    return %c0_i32, %c0_i32_0 : i32, i32
  }
  func.func @transform_2(%arg0: i32) -> (i32, i32, i32) {
    %c0_i32 = arith.constant 0 : i32
    %c0_i32_0 = arith.constant 0 : i32
    %c0_i32_1 = arith.constant 0 : i32
    return %arg0, %c0_i32, %c0_i32_0 : i32, i32, i32
  }
}

</mosaic_0001>

<llo_original>
// kernel: tpu_custom_call.1
$region0: #{tpu_custom_call.1}
  #allocation0 [shape = 'u32[]', space=smem, size = 0x4, offset = 0x4, fixed_abs, tag = 'smem constant byte address 0x4 - core index']
  #allocation1 [shape = 'u32[144,128]{1,0:T(1,128)}', space=vmem, size = 0x12000, scoped, tag = 'internal scratch']
  #allocation2 [shape = 'f32[2,32]{1,0:T(2,128)}', space=vmem, size = 0x400, scoped, tag = 'scratch operand']
  %s0 = inlined_call_operand.hbm [shape: f32[8,2,32], index: 0, kind: input, shape index: {}]
  %s1 = inlined_call_operand.hbm [shape: f32[32,32], index: 1, kind: input, shape index: {}]
  %s2 = inlined_call_operand.hbm [shape: f32[8,2,32], index: 2, kind: output, shape index: {}]
  %s3 = sld [smem:[#allocation0]]
  $region30: #{tpu_custom_call.1} parent=0
    _
  %s5 = ssub.s32 1, %s3
  %s6 = scalar_select 0, %s5, %s3
  $region1: #{tpu_custom_call.1} parent=0
    #allocation3 [shape = 'u8[8192]{0}', space=vmem, size = 0x2000, scoped, tag = 'input window, operand 0, single buffered']
    #allocation4 [shape = 's32[1]{0}', space=sflag, size = 0x4, scoped, tag = 'scoped memory for tpu_custom_call.1']
    #allocation5 [shape = 's32[1]{0}', space=sflag, size = 0x4, scoped, tag = 'scoped memory for tpu_custom_call.1']
    #allocation6 [shape = 'u8[16384]{0}', space=vmem, size = 0x4000, scoped, tag = 'input window, operand 1, single buffered']
    #allocation7 [shape = 's32[1]{0}', space=sflag, size = 0x4, scoped, tag = 'scoped memory for tpu_custom_call.1']
    #allocation8 [shape = 'u8[8192]{0}', space=vmem, size = 0x2000, scoped, tag = 'output window, operand 0, single buffered']
    %7 = vsyncpa [#allocation4], 0
    %8 = vsyncpa [#allocation7], 0
    %9 = vsyncpa [#allocation5], 0
    // Predicated region
    $region2: #{tpu_custom_call.1} parent=1 // pred_check
      _
    $region3: #{tpu_custom_call.1} parent=1 // pred_check_branch
      %11 = sbr.rel (0) target = $region5
    $region4: #{tpu_custom_call.1} parent=1 // pred_region
      %s13 = ssub.s32 256, 256
      %14 = vsyncadd [#allocation4], %s13
      %s15 = sshll.u32 [#allocation3], 4
      %s16 = int_to_ptr.vmem [resolvable:$true] %s15
      %21 = dma.hbm_to_vmem [thread:$0]  %s0, 256, %s16, [#allocation4], 32, 32, 2
    $region5: #{tpu_custom_call.1} parent=1 // pred_fallthru
      _
    // Predicated region
    $region6: #{tpu_custom_call.1} parent=1 // pred_check
      _
    $region7: #{tpu_custom_call.1} parent=1 // pred_check_branch
      %23 = sbr.rel (0) target = $region9
    $region8: #{tpu_custom_call.1} parent=1 // pred_region
      %s25 = ssub.s32 512, 512
      %26 = vsyncadd [#allocation7], %s25
      %s27 = sshll.u32 [#allocation6], 4
      %s28 = int_to_ptr.vmem [resolvable:$true] %s27
      %33 = dma.hbm_to_vmem [thread:$0]  %s1, 512, %s28, [#allocation7], 128, 128, 8
    $region9: #{tpu_custom_call.1} parent=1 // pred_fallthru
      _
    // Predicated region
    $region10: #{tpu_custom_call.1} parent=1 // pred_check
      _
    $region11: #{tpu_custom_call.1} parent=1 // pred_check_branch
      %35 = sbr.rel (0) target = $region13
    $region12: #{tpu_custom_call.1} parent=1 // pred_region
      %36 = dma.done [#allocation4], 256
    $region13: #{tpu_custom_call.1} parent=1 // pred_fallthru
      _
    // Predicated region
    $region14: #{tpu_custom_call.1} parent=1 // pred_check
      _
    $region15: #{tpu_custom_call.1} parent=1 // pred_check_branch
      %38 = sbr.rel (0) target = $region17
    $region16: #{tpu_custom_call.1} parent=1 // pred_region
      %39 = dma.done [#allocation7], 512
    $region17: #{tpu_custom_call.1} parent=1 // pred_fallthru
      _
    %p40 = scmp.eq.s32.totalorder 0, 0
    // Predicated region
    $region18: #{tpu_custom_call.1} parent=1 // pred_check
      %p41 = pneg %p40
    $region19: #{tpu_custom_call.1} parent=1 // pred_check_branch
      %43 = sbr.rel (%p41) target = $region21
    $region20: #{tpu_custom_call.1} parent=1 // pred_region
      %vm44 = vcmask 254976
      %45 = vst.msk [vmem:[#allocation2] sm:$0x3] %vm44, 0.0
    $region21: #{tpu_custom_call.1} parent=1 // pred_fallthru
      _
    %v46 = vld [vmem:[#allocation6] sm:$0xff]
    %v47 = vld [vmem:[#allocation6 + $0x8] sm:$0xff]
    %v48 = vld [vmem:[#allocation6 + $0x10] sm:$0xff]
    %v49 = vld [vmem:[#allocation6 + $0x18] sm:$0xff]
    %v50 = vld [vmem:[#allocation2] sm:$0x3]
    %v51 = vld [vmem:[#allocation3] sm:$0x3]
    %vm52 = vcmask 261120
    %v54 = vsel %vm52, %v50, 0
    %56 = vmatprep.subr.mxu0 0.0
    %57 = vmatpush1.msra.mxu0 %v46
    %58 = vmatprep.subr.mxu0 0.0
    %59 = vmatpush1.msra.mxu0 %v47
    %60 = vmatprep.subr.mxu0 0.0
    %61 = vmatpush1.msra.mxu0 %v48
    %62 = vmatprep.subr.mxu0 0.0
    %63 = vmatpush1.msra.mxu0 %v49
    %64 = vmatprep.subr.mxu0 0.0
    %65 = vmatpush1.msra.mxu0 0.0
    %66 = vmatprep.subr.mxu0 0.0
    %67 = vmatpush1.msra.mxu0 0.0
    %68 = vmatprep.subr.mxu0 0.0
    %69 = vmatpush1.msra.mxu0 0.0
    %70 = vmatprep.subr.mxu0 0.0
    %71 = vmatpush1.msra.mxu0 0.0
    %72 = vmatprep.subr.mxu0 0.0
    %73 = vmatpush1.msra.mxu0 0.0
    %74 = vmatprep.subr.mxu0 0.0
    %75 = vmatpush1.msra.mxu0 0.0
    %76 = vmatprep.subr.mxu0 0.0
    %77 = vmatpush1.msra.mxu0 0.0
    %78 = vmatprep.subr.mxu0 0.0
    %79 = vmatpush1.msra.mxu0 0.0
    %80 = vmatprep.subr.mxu0 0.0
    %81 = vmatpush1.msra.mxu0 0.0
    %82 = vmatprep.subr.mxu0 0.0
    %83 = vmatpush1.msra.mxu0 0.0
    %84 = vmatprep.subr.mxu0 0.0
    %85 = vmatpush1.msra.mxu0 0.0
    %86 = vmatprep.subr.mxu0 0.0
    %87 = vmatpush1.msra.mxu0 0.0
    %88 = vmatprep.subr.mxu0 0.0
    %89 = vmatpush1.msra.mxu0 0.0
    %90 = vmatprep.subr.mxu0 0.0
    %91 = vmatpush1.msra.mxu0 0.0
    %92 = vmatprep.subr.mxu0 0.0
    %93 = vmatpush1.msra.mxu0 0.0
    %94 = vmatprep.subr.mxu0 0.0
    %95 = vmatpush1.msra.mxu0 0.0
    %96 = vmatprep.subr.mxu0 0.0
    %97 = vmatpush1.msra.mxu0 0.0
    %98 = vmatprep.subr.mxu0 0.0
    %99 = vmatpush1.msra.mxu0 0.0
    %100 = vmatprep.subr.mxu0 0.0
    %101 = vmatpush1.msra.mxu0 0.0
    %102 = vmatprep.subr.mxu0 0.0
    %103 = vmatpush1.msra.mxu0 0.0
    %104 = vmatprep.subr.mxu0 0.0
    %105 = vmatpush1.msra.mxu0 0.0
    %106 = vmatprep.subr.mxu0 0.0
    %107 = vmatpush1.msra.mxu0 0.0
    %108 = vmatprep.subr.mxu0 0.0
    %109 = vmatpush1.msra.mxu0 0.0
    %110 = vmatprep.subr.mxu0 0.0
    %111 = vmatpush1.msra.mxu0 0.0
    %112 = vmatprep.subr.mxu0 0.0
    %113 = vmatpush1.msra.mxu0 0.0
    %114 = vmatprep.subr.mxu0 0.0
    %115 = vmatpush1.msra.mxu0 0.0
    %116 = vmatprep.subr.mxu0 0.0
    %117 = vmatpush1.msra.mxu0 0.0
    %118 = vmatprep.subr.mxu0 0.0
    %119 = vmatpush1.msra.mxu0 0.0
    %120 = vmatprep.mubr.f32.mxu0 0.0
    %121 = vmatmul.mubr.f32.gmra.mrb[0].mxu0 %v54
    %v122 = vpop.f32.mrb[0].mxu0
    %v123 = vadd.f32 0.0, %v122
    %v124 = vpop.f32.mrb[0].mxu0
    %125 = vdwg.mxu0
    %v126 = vadd.f32 %v51, %v123
    %v127 = vtanh.pop %v126
    %v128 = vmul.f32 %v50, 0.9
    %v129 = vmul.f32 %v127, 0.1
    %v130 = vadd.f32 %v128, %v129
    %vm131 = vcmask 254976
    %132 = vst.msk [vmem:[#allocation8] sm:$0x3] %vm131, %v130
    %s133 = scalar_lea.vmem [#allocation3], 2
    %v134 = vld [vmem:[%s133] sm:$0x3]
    %v136 = vsel %vm52, %v130, 0
    %138 = vmatprep.subr.mxu0 0.0
    %139 = vmatpush1.msra.mxu0 %v46
    %140 = vmatprep.subr.mxu0 0.0
    %141 = vmatpush1.msra.mxu0 %v47
    %142 = vmatprep.subr.mxu0 0.0
    %143 = vmatpush1.msra.mxu0 %v48
    %144 = vmatprep.subr.mxu0 0.0
    %145 = vmatpush1.msra.mxu0 %v49
    %146 = vmatprep.subr.mxu0 0.0
    %147 = vmatpush1.msra.mxu0 0.0
    %148 = vmatprep.subr.mxu0 0.0
    %149 = vmatpush1.msra.mxu0 0.0
    %150 = vmatprep.subr.mxu0 0.0
    %151 = vmatpush1.msra.mxu0 0.0
    %152 = vmatprep.subr.mxu0 0.0
    %153 = vmatpush1.msra.mxu0 0.0
    %154 = vmatprep.subr.mxu0 0.0
    %155 = vmatpush1.msra.mxu0 0.0
    %156 = vmatprep.subr.mxu0 0.0
    %157 = vmatpush1.msra.mxu0 0.0
    %158 = vmatprep.subr.mxu0 0.0
    %159 = vmatpush1.msra.mxu0 0.0
    %160 = vmatprep.subr.mxu0 0.0
    %161 = vmatpush1.msra.mxu0 0.0
    %162 = vmatprep.subr.mxu0 0.0
    %163 = vmatpush1.msra.mxu0 0.0
    %164 = vmatprep.subr.mxu0 0.0
    %165 = vmatpush1.msra.mxu0 0.0
    %166 = vmatprep.subr.mxu0 0.0
    %167 = vmatpush1.msra.mxu0 0.0
    %168 = vmatprep.subr.mxu0 0.0
    %169 = vmatpush1.msra.mxu0 0.0
    %170 = vmatprep.subr.mxu0 0.0
    %171 = vmatpush1.msra.mxu0 0.0
    %172 = vmatprep.subr.mxu0 0.0
    %173 = vmatpush1.msra.mxu0 0.0
    %174 = vmatprep.subr.mxu0 0.0
    %175 = vmatpush1.msra.mxu0 0.0
    %176 = vmatprep.subr.mxu0 0.0
    %177 = vmatpush1.msra.mxu0 0.0
    %178 = vmatprep.subr.mxu0 0.0
    %179 = vmatpush1.msra.mxu0 0.0
    %180 = vmatprep.subr.mxu0 0.0
    %181 = vmatpush1.msra.mxu0 0.0
    %182 = vmatprep.subr.mxu0 0.0
    %183 = vmatpush1.msra.mxu0 0.0
    %184 = vmatprep.subr.mxu0 0.0
    %185 = vmatpush1.msra.mxu0 0.0
    %186 = vmatprep.subr.mxu0 0.0
    %187 = vmatpush1.msra.mxu0 0.0
    %188 = vmatprep.subr.mxu0 0.0
    %189 = vmatpush1.msra.mxu0 0.0
    %190 = vmatprep.subr.mxu0 0.0
    %191 = vmatpush1.msra.mxu0 0.0
    %192 = vmatprep.subr.mxu0 0.0
    %193 = vmatpush1.msra.mxu0 0.0
    %194 = vmatprep.subr.mxu0 0.0
    %195 = vmatpush1.msra.mxu0 0.0
    %196 = vmatprep.subr.mxu0 0.0
    %197 = vmatpush1.msra.mxu0 0.0
    %198 = vmatprep.subr.mxu0 0.0
    %199 = vmatpush1.msra.mxu0 0.0
    %200 = vmatprep.subr.mxu0 0.0
    %201 = vmatpush1.msra.mxu0 0.0
    %202 = vmatprep.mubr.f32.mxu0 0.0
    %203 = vmatmul.mubr.f32.gmra.mrb[0].mxu0 %v136
    %v204 = vpop.f32.mrb[0].mxu0
    %v205 = vadd.f32 0.0, %v204
    %v206 = vpop.f32.mrb[0].mxu0
    %207 = vdwg.mxu0
    %v208 = vadd.f32 %v134, %v205
    %v209 = vtanh.pop %v208
    %v210 = vmul.f32 %v130, 0.9
    %v211 = vmul.f32 %v209, 0.1
    %v212 = vadd.f32 %v210, %v211
    %s213 = scalar_lea.vmem [#allocation8], 2
    %214 = vst.msk [vmem:[%s213] sm:$0x3] %vm131, %v212
    %s215 = scalar_lea.vmem [#allocation3], 4
    %v216 = vld [vmem:[%s215] sm:$0x3]
    %v218 = vsel %vm52, %v212, 0
    %220 = vmatprep.subr.mxu0 0.0
    %221 = vmatpush1.msra.mxu0 %v46
    %222 = vmatprep.subr.mxu0 0.0
    %223 = vmatpush1.msra.mxu0 %v47
    %224 = vmatprep.subr.mxu0 0.0
    %225 = vmatpush1.msra.mxu0 %v48
    %226 = vmatprep.subr.mxu0 0.0
    %227 = vmatpush1.msra.mxu0 %v49
    %228 = vmatprep.subr.mxu0 0.0
    %229 = vmatpush1.msra.mxu0 0.0
    %230 = vmatprep.subr.mxu0 0.0
    %231 = vmatpush1.msra.mxu0 0.0
    %232 = vmatprep.subr.mxu0 0.0
    %233 = vmatpush1.msra.mxu0 0.0
    %234 = vmatprep.subr.mxu0 0.0
    %235 = vmatpush1.msra.mxu0 0.0
    %236 = vmatprep.subr.mxu0 0.0
    %237 = vmatpush1.msra.mxu0 0.0
    %238 = vmatprep.subr.mxu0 0.0
    %239 = vmatpush1.msra.mxu0 0.0
    %240 = vmatprep.subr.mxu0 0.0
    %241 = vmatpush1.msra.mxu0 0.0
    %242 = vmatprep.subr.mxu0 0.0
    %243 = vmatpush1.msra.mxu0 0.0
    %244 = vmatprep.subr.mxu0 0.0
    %245 = vmatpush1.msra.mxu0 0.0
    %246 = vmatprep.subr.mxu0 0.0
    %247 = vmatpush1.msra.mxu0 0.0
    %248 = vmatprep.subr.mxu0 0.0
    %249 = vmatpush1.msra.mxu0 0.0
    %250 = vmatprep.subr.mxu0 0.0
    %251 = vmatpush1.msra.mxu0 0.0
    %252 = vmatprep.subr.mxu0 0.0
    %253 = vmatpush1.msra.mxu0 0.0
    %254 = vmatprep.subr.mxu0 0.0
    %255 = vmatpush1.msra.mxu0 0.0
    %256 = vmatprep.subr.mxu0 0.0
    %257 = vmatpush1.msra.mxu0 0.0
    %258 = vmatprep.subr.mxu0 0.0
    %259 = vmatpush1.msra.mxu0 0.0
    %260 = vmatprep.subr.mxu0 0.0
    %261 = vmatpush1.msra.mxu0 0.0
    %262 = vmatprep.subr.mxu0 0.0
    %263 = vmatpush1.msra.mxu0 0.0
    %264 = vmatprep.subr.mxu0 0.0
    %265 = vmatpush1.msra.mxu0 0.0
    %266 = vmatprep.subr.mxu0 0.0
    %267 = vmatpush1.msra.mxu0 0.0
    %268 = vmatprep.subr.mxu0 0.0
    %269 = vmatpush1.msra.mxu0 0.0
    %270 = vmatprep.subr.mxu0 0.0
    %271 = vmatpush1.msra.mxu0 0.0
    %272 = vmatprep.subr.mxu0 0.0
    %273 = vmatpush1.msra.mxu0 0.0
    %274 = vmatprep.subr.mxu0 0.0
    %275 = vmatpush1.msra.mxu0 0.0
    %276 = vmatprep.subr.mxu0 0.0
    %277 = vmatpush1.msra.mxu0 0.0
    %278 = vmatprep.subr.mxu0 0.0
    %279 = vmatpush1.msra.mxu0 0.0
    %280 = vmatprep.subr.mxu0 0.0
    %281 = vmatpush1.msra.mxu0 0.0
    %282 = vmatprep.subr.mxu0 0.0
    %283 = vmatpush1.msra.mxu0 0.0
    %284 = vmatprep.mubr.f32.mxu0 0.0
    %285 = vmatmul.mubr.f32.gmra.mrb[0].mxu0 %v218
    %v286 = vpop.f32.mrb[0].mxu0
    %v287 = vadd.f32 0.0, %v286
    %v288 = vpop.f32.mrb[0].mxu0
    %289 = vdwg.mxu0
    %v290 = vadd.f32 %v216, %v287
    %v291 = vtanh.pop %v290
    %v292 = vmul.f32 %v212, 0.9
    %v293 = vmul.f32 %v291, 0.1
    %v294 = vadd.f32 %v292, %v293
    %s295 = scalar_lea.vmem [#allocation8], 4
    %296 = vst.msk [vmem:[%s295] sm:$0x3] %vm131, %v294
    %s297 = scalar_lea.vmem [#allocation3], 6
    %v298 = vld [vmem:[%s297] sm:$0x3]
    %v300 = vsel %vm52, %v294, 0
    %302 = vmatprep.subr.mxu0 0.0
    %303 = vmatpush1.msra.mxu0 %v46
    %304 = vmatprep.subr.mxu0 0.0
    %305 = vmatpush1.msra.mxu0 %v47
    %306 = vmatprep.subr.mxu0 0.0
    %307 = vmatpush1.msra.mxu0 %v48
    %308 = vmatprep.subr.mxu0 0.0
    %309 = vmatpush1.msra.mxu0 %v49
    %310 = vmatprep.subr.mxu0 0.0
    %311 = vmatpush1.msra.mxu0 0.0
    %312 = vmatprep.subr.mxu0 0.0
    %313 = vmatpush1.msra.mxu0 0.0
    %314 = vmatprep.subr.mxu0 0.0
    %315 = vmatpush1.msra.mxu0 0.0
    %316 = vmatprep.subr.mxu0 0.0
    %317 = vmatpush1.msra.mxu0 0.0
    %318 = vmatprep.subr.mxu0 0.0
    %319 = vmatpush1.msra.mxu0 0.0
    %320 = vmatprep.subr.mxu0 0.0
    %321 = vmatpush1.msra.mxu0 0.0
    %322 = vmatprep.subr.mxu0 0.0
    %323 = vmatpush1.msra.mxu0 0.0
    %324 = vmatprep.subr.mxu0 0.0
    %325 = vmatpush1.msra.mxu0 0.0
    %326 = vmatprep.subr.mxu0 0.0
    %327 = vmatpush1.msra.mxu0 0.0
    %328 = vmatprep.subr.mxu0 0.0
    %329 = vmatpush1.msra.mxu0 0.0
    %330 = vmatprep.subr.mxu0 0.0
    %331 = vmatpush1.msra.mxu0 0.0
    %332 = vmatprep.subr.mxu0 0.0
    %333 = vmatpush1.msra.mxu0 0.0
    %334 = vmatprep.subr.mxu0 0.0
    %335 = vmatpush1.msra.mxu0 0.0
    %336 = vmatprep.subr.mxu0 0.0
    %337 = vmatpush1.msra.mxu0 0.0
    %338 = vmatprep.subr.mxu0 0.0
    %339 = vmatpush1.msra.mxu0 0.0
    %340 = vmatprep.subr.mxu0 0.0
    %341 = vmatpush1.msra.mxu0 0.0
    %342 = vmatprep.subr.mxu0 0.0
    %343 = vmatpush1.msra.mxu0 0.0
    %344 = vmatprep.subr.mxu0 0.0
    %345 = vmatpush1.msra.mxu0 0.0
    %346 = vmatprep.subr.mxu0 0.0
    %347 = vmatpush1.msra.mxu0 0.0
    %348 = vmatprep.subr.mxu0 0.0
    %349 = vmatpush1.msra.mxu0 0.0
    %350 = vmatprep.subr.mxu0 0.0
    %351 = vmatpush1.msra.mxu0 0.0
    %352 = vmatprep.subr.mxu0 0.0
    %353 = vmatpush1.msra.mxu0 0.0
    %354 = vmatprep.subr.mxu0 0.0
    %355 = vmatpush1.msra.mxu0 0.0
    %356 = vmatprep.subr.mxu0 0.0
    %357 = vmatpush1.msra.mxu0 0.0
    %358 = vmatprep.subr.mxu0 0.0
    %359 = vmatpush1.msra.mxu0 0.0
    %360 = vmatprep.subr.mxu0 0.0
    %361 = vmatpush1.msra.mxu0 0.0
    %362 = vmatprep.subr.mxu0 0.0
    %363 = vmatpush1.msra.mxu0 0.0
    %364 = vmatprep.subr.mxu0 0.0
    %365 = vmatpush1.msra.mxu0 0.0
    %366 = vmatprep.mubr.f32.mxu0 0.0
    %367 = vmatmul.mubr.f32.gmra.mrb[0].mxu0 %v300
    %v368 = vpop.f32.mrb[0].mxu0
    %v369 = vadd.f32 0.0, %v368
    %v370 = vpop.f32.mrb[0].mxu0
    %371 = vdwg.mxu0
    %v372 = vadd.f32 %v298, %v369
    %v373 = vtanh.pop %v372
    %v374 = vmul.f32 %v294, 0.9
    %v375 = vmul.f32 %v373, 0.1
    %v376 = vadd.f32 %v374, %v375
    %s377 = scalar_lea.vmem [#allocation8], 6
    %378 = vst.msk [vmem:[%s377] sm:$0x3] %vm131, %v376
    %s379 = scalar_lea.vmem [#allocation3], 8
    %v380 = vld [vmem:[%s379] sm:$0x3]
    %v382 = vsel %vm52, %v376, 0
    %384 = vmatprep.subr.mxu0 0.0
    %385 = vmatpush1.msra.mxu0 %v46
    %386 = vmatprep.subr.mxu0 0.0
    %387 = vmatpush1.msra.mxu0 %v47
    %388 = vmatprep.subr.mxu0 0.0
    %389 = vmatpush1.msra.mxu0 %v48
    %390 = vmatprep.subr.mxu0 0.0
    %391 = vmatpush1.msra.mxu0 %v49
    %392 = vmatprep.subr.mxu0 0.0
    %393 = vmatpush1.msra.mxu0 0.0
    %394 = vmatprep.subr.mxu0 0.0
    %395 = vmatpush1.msra.mxu0 0.0
    %396 = vmatprep.subr.mxu0 0.0
    %397 = vmatpush1.msra.mxu0 0.0
    %398 = vmatprep.subr.mxu0 0.0
    %399 = vmatpush1.msra.mxu0 0.0
    %400 = vmatprep.subr.mxu0 0.0
    %401 = vmatpush1.msra.mxu0 0.0
    %402 = vmatprep.subr.mxu0 0.0
    %403 = vmatpush1.msra.mxu0 0.0
    %404 = vmatprep.subr.mxu0 0.0
    %405 = vmatpush1.msra.mxu0 0.0
    %406 = vmatprep.subr.mxu0 0.0
    %407 = vmatpush1.msra.mxu0 0.0
    %408 = vmatprep.subr.mxu0 0.0
    %409 = vmatpush1.msra.mxu0 0.0
    %410 = vmatprep.subr.mxu0 0.0
    %411 = vmatpush1.msra.mxu0 0.0
    %412 = vmatprep.subr.mxu0 0.0
    %413 = vmatpush1.msra.mxu0 0.0
    %414 = vmatprep.subr.mxu0 0.0
    %415 = vmatpush1.msra.mxu0 0.0
    %416 = vmatprep.subr.mxu0 0.0
    %417 = vmatpush1.msra.mxu0 0.0
    %418 = vmatprep.subr.mxu0 0.0
    %419 = vmatpush1.msra.mxu0 0.0
    %420 = vmatprep.subr.mxu0 0.0
    %421 = vmatpush1.msra.mxu0 0.0
    %422 = vmatprep.subr.mxu0 0.0
    %423 = vmatpush1.msra.mxu0 0.0
    %424 = vmatprep.subr.mxu0 0.0
    %425 = vmatpush1.msra.mxu0 0.0
    %426 = vmatprep.subr.mxu0 0.0
    %427 = vmatpush1.msra.mxu0 0.0
    %428 = vmatprep.subr.mxu0 0.0
    %429 = vmatpush1.msra.mxu0 0.0
    %430 = vmatprep.subr.mxu0 0.0
    %431 = vmatpush1.msra.mxu0 0.0
    %432 = vmatprep.subr.mxu0 0.0
    %433 = vmatpush1.msra.mxu0 0.0
    %434 = vmatprep.subr.mxu0 0.0
    %435 = vmatpush1.msra.mxu0 0.0
    %436 = vmatprep.subr.mxu0 0.0
    %437 = vmatpush1.msra.mxu0 0.0
    %438 = vmatprep.subr.mxu0 0.0
    %439 = vmatpush1.msra.mxu0 0.0
    %440 = vmatprep.subr.mxu0 0.0
    %441 = vmatpush1.msra.mxu0 0.0
    %442 = vmatprep.subr.mxu0 0.0
    %443 = vmatpush1.msra.mxu0 0.0
    %444 = vmatprep.subr.mxu0 0.0
    %445 = vmatpush1.msra.mxu0 0.0
    %446 = vmatprep.subr.mxu0 0.0
    %447 = vmatpush1.msra.mxu0 0.0
    %448 = vmatprep.mubr.f32.mxu0 0.0
    %449 = vmatmul.mubr.f32.gmra.mrb[0].mxu0 %v382
    %v450 = vpop.f32.mrb[0].mxu0
    %v451 = vadd.f32 0.0, %v450
    %v452 = vpop.f32.mrb[0].mxu0
    %453 = vdwg.mxu0
    %v454 = vadd.f32 %v380, %v451
    %v455 = vtanh.pop %v454
    %v456 = vmul.f32 %v376, 0.9
    %v457 = vmul.f32 %v455, 0.1
    %v458 = vadd.f32 %v456, %v457
    %s459 = scalar_lea.vmem [#allocation8], 8
    %460 = vst.msk [vmem:[%s459] sm:$0x3] %vm131, %v458
    %s461 = scalar_lea.vmem [#allocation3], 10
    %v462 = vld [vmem:[%s461] sm:$0x3]
    %v464 = vsel %vm52, %v458, 0
    %466 = vmatprep.subr.mxu0 0.0
    %467 = vmatpush1.msra.mxu0 %v46
    %468 = vmatprep.subr.mxu0 0.0
    %469 = vmatpush1.msra.mxu0 %v47
    %470 = vmatprep.subr.mxu0 0.0
    %471 = vmatpush1.msra.mxu0 %v48
    %472 = vmatprep.subr.mxu0 0.0
    %473 = vmatpush1.msra.mxu0 %v49
    %474 = vmatprep.subr.mxu0 0.0
    %475 = vmatpush1.msra.mxu0 0.0
    %476 = vmatprep.subr.mxu0 0.0
    %477 = vmatpush1.msra.mxu0 0.0
    %478 = vmatprep.subr.mxu0 0.0
    %479 = vmatpush1.msra.mxu0 0.0
    %480 = vmatprep.subr.mxu0 0.0
    %481 = vmatpush1.msra.mxu0 0.0
    %482 = vmatprep.subr.mxu0 0.0
    %483 = vmatpush1.msra.mxu0 0.0
    %484 = vmatprep.subr.mxu0 0.0
    %485 = vmatpush1.msra.mxu0 0.0
    %486 = vmatprep.subr.mxu0 0.0
    %487 = vmatpush1.msra.mxu0 0.0
    %488 = vmatprep.subr.mxu0 0.0
    %489 = vmatpush1.msra.mxu0 0.0
    %490 = vmatprep.subr.mxu0 0.0
    %491 = vmatpush1.msra.mxu0 0.0
    %492 = vmatprep.subr.mxu0 0.0
    %493 = vmatpush1.msra.mxu0 0.0
    %494 = vmatprep.subr.mxu0 0.0
    %495 = vmatpush1.msra.mxu0 0.0
    %496 = vmatprep.subr.mxu0 0.0
    %497 = vmatpush1.msra.mxu0 0.0
    %498 = vmatprep.subr.mxu0 0.0
    %499 = vmatpush1.msra.mxu0 0.0
    %500 = vmatprep.subr.mxu0 0.0
    %501 = vmatpush1.msra.mxu0 0.0
    %502 = vmatprep.subr.mxu0 0.0
    %503 = vmatpush1.msra.mxu0 0.0
    %504 = vmatprep.subr.mxu0 0.0
    %505 = vmatpush1.msra.mxu0 0.0
    %506 = vmatprep.subr.mxu0 0.0
    %507 = vmatpush1.msra.mxu0 0.0
    %508 = vmatprep.subr.mxu0 0.0
    %509 = vmatpush1.msra.mxu0 0.0
    %510 = vmatprep.subr.mxu0 0.0
    %511 = vmatpush1.msra.mxu0 0.0
    %512 = vmatprep.subr.mxu0 0.0
    %513 = vmatpush1.msra.mxu0 0.0
    %514 = vmatprep.subr.mxu0 0.0
    %515 = vmatpush1.msra.mxu0 0.0
    %516 = vmatprep.subr.mxu0 0.0
    %517 = vmatpush1.msra.mxu0 0.0
    %518 = vmatprep.subr.mxu0 0.0
    %519 = vmatpush1.msra.mxu0 0.0
    %520 = vmatprep.subr.mxu0 0.0
    %521 = vmatpush1.msra.mxu0 0.0
    %522 = vmatprep.subr.mxu0 0.0
    %523 = vmatpush1.msra.mxu0 0.0
    %524 = vmatprep.subr.mxu0 0.0
    %525 = vmatpush1.msra.mxu0 0.0
    %526 = vmatprep.subr.mxu0 0.0
    %527 = vmatpush1.msra.mxu0 0.0
    %528 = vmatprep.subr.mxu0 0.0
    %529 = vmatpush1.msra.mxu0 0.0
    %530 = vmatprep.mubr.f32.mxu0 0.0
    %531 = vmatmul.mubr.f32.gmra.mrb[0].mxu0 %v464
    %v532 = vpop.f32.mrb[0].mxu0
    %v533 = vadd.f32 0.0, %v532
    %v534 = vpop.f32.mrb[0].mxu0
    %535 = vdwg.mxu0
    %v536 = vadd.f32 %v462, %v533
    %v537 = vtanh.pop %v536
    %v538 = vmul.f32 %v458, 0.9
    %v539 = vmul.f32 %v537, 0.1
    %v540 = vadd.f32 %v538, %v539
    %s541 = scalar_lea.vmem [#allocation8], 10
    %542 = vst.msk [vmem:[%s541] sm:$0x3] %vm131, %v540
    %s543 = scalar_lea.vmem [#allocation3], 12
    %v544 = vld [vmem:[%s543] sm:$0x3]
    %v546 = vsel %vm52, %v540, 0
    %548 = vmatprep.subr.mxu0 0.0
    %549 = vmatpush1.msra.mxu0 %v46
    %550 = vmatprep.subr.mxu0 0.0
    %551 = vmatpush1.msra.mxu0 %v47
    %552 = vmatprep.subr.mxu0 0.0
    %553 = vmatpush1.msra.mxu0 %v48
    %554 = vmatprep.subr.mxu0 0.0
    %555 = vmatpush1.msra.mxu0 %v49
    %556 = vmatprep.subr.mxu0 0.0
    %557 = vmatpush1.msra.mxu0 0.0
    %558 = vmatprep.subr.mxu0 0.0
    %559 = vmatpush1.msra.mxu0 0.0
    %560 = vmatprep.subr.mxu0 0.0
    %561 = vmatpush1.msra.mxu0 0.0
    %562 = vmatprep.subr.mxu0 0.0
    %563 = vmatpush1.msra.mxu0 0.0
    %564 = vmatprep.subr.mxu0 0.0
    %565 = vmatpush1.msra.mxu0 0.0
    %566 = vmatprep.subr.mxu0 0.0
    %567 = vmatpush1.msra.mxu0 0.0
    %568 = vmatprep.subr.mxu0 0.0
    %569 = vmatpush1.msra.mxu0 0.0
    %570 = vmatprep.subr.mxu0 0.0
    %571 = vmatpush1.msra.mxu0 0.0
    %572 = vmatprep.subr.mxu0 0.0
    %573 = vmatpush1.msra.mxu0 0.0
    %574 = vmatprep.subr.mxu0 0.0
    %575 = vmatpush1.msra.mxu0 0.0
    %576 = vmatprep.subr.mxu0 0.0
    %577 = vmatpush1.msra.mxu0 0.0
    %578 = vmatprep.subr.mxu0 0.0
    %579 = vmatpush1.msra.mxu0 0.0
    %580 = vmatprep.subr.mxu0 0.0
    %581 = vmatpush1.msra.mxu0 0.0
    %582 = vmatprep.subr.mxu0 0.0
    %583 = vmatpush1.msra.mxu0 0.0
    %584 = vmatprep.subr.mxu0 0.0
    %585 = vmatpush1.msra.mxu0 0.0
    %586 = vmatprep.subr.mxu0 0.0
    %587 = vmatpush1.msra.mxu0 0.0
    %588 = vmatprep.subr.mxu0 0.0
    %589 = vmatpush1.msra.mxu0 0.0
    %590 = vmatprep.subr.mxu0 0.0
    %591 = vmatpush1.msra.mxu0 0.0
    %592 = vmatprep.subr.mxu0 0.0
    %593 = vmatpush1.msra.mxu0 0.0
    %594 = vmatprep.subr.mxu0 0.0
    %595 = vmatpush1.msra.mxu0 0.0
    %596 = vmatprep.subr.mxu0 0.0
    %597 = vmatpush1.msra.mxu0 0.0
    %598 = vmatprep.subr.mxu0 0.0
    %599 = vmatpush1.msra.mxu0 0.0
    %600 = vmatprep.subr.mxu0 0.0
    %601 = vmatpush1.msra.mxu0 0.0
    %602 = vmatprep.subr.mxu0 0.0
    %603 = vmatpush1.msra.mxu0 0.0
    %604 = vmatprep.subr.mxu0 0.0
    %605 = vmatpush1.msra.mxu0 0.0
    %606 = vmatprep.subr.mxu0 0.0
    %607 = vmatpush1.msra.mxu0 0.0
    %608 = vmatprep.subr.mxu0 0.0
    %609 = vmatpush1.msra.mxu0 0.0
    %610 = vmatprep.subr.mxu0 0.0
    %611 = vmatpush1.msra.mxu0 0.0
    %612 = vmatprep.mubr.f32.mxu0 0.0
    %613 = vmatmul.mubr.f32.gmra.mrb[0].mxu0 %v546
    %v614 = vpop.f32.mrb[0].mxu0
    %v615 = vadd.f32 0.0, %v614
    %v616 = vpop.f32.mrb[0].mxu0
    %617 = vdwg.mxu0
    %v618 = vadd.f32 %v544, %v615
    %v619 = vtanh.pop %v618
    %v620 = vmul.f32 %v540, 0.9
    %v621 = vmul.f32 %v619, 0.1
    %v622 = vadd.f32 %v620, %v621
    %s623 = scalar_lea.vmem [#allocation8], 12
    %624 = vst.msk [vmem:[%s623] sm:$0x3] %vm131, %v622
    %s625 = scalar_lea.vmem [#allocation3], 14
    %v626 = vld [vmem:[%s625] sm:$0x3]
    %v628 = vsel %vm52, %v622, 0
    %630 = vmatprep.subr.mxu0 0.0
    %631 = vmatpush1.msra.mxu0 %v46
    %632 = vmatprep.subr.mxu0 0.0
    %633 = vmatpush1.msra.mxu0 %v47
    %634 = vmatprep.subr.mxu0 0.0
    %635 = vmatpush1.msra.mxu0 %v48
    %636 = vmatprep.subr.mxu0 0.0
    %637 = vmatpush1.msra.mxu0 %v49
    %638 = vmatprep.subr.mxu0 0.0
    %639 = vmatpush1.msra.mxu0 0.0
    %640 = vmatprep.subr.mxu0 0.0
    %641 = vmatpush1.msra.mxu0 0.0
    %642 = vmatprep.subr.mxu0 0.0
    %643 = vmatpush1.msra.mxu0 0.0
    %644 = vmatprep.subr.mxu0 0.0
    %645 = vmatpush1.msra.mxu0 0.0
    %646 = vmatprep.subr.mxu0 0.0
    %647 = vmatpush1.msra.mxu0 0.0
    %648 = vmatprep.subr.mxu0 0.0
    %649 = vmatpush1.msra.mxu0 0.0
    %650 = vmatprep.subr.mxu0 0.0
    %651 = vmatpush1.msra.mxu0 0.0
    %652 = vmatprep.subr.mxu0 0.0
    %653 = vmatpush1.msra.mxu0 0.0
    %654 = vmatprep.subr.mxu0 0.0
    %655 = vmatpush1.msra.mxu0 0.0
    %656 = vmatprep.subr.mxu0 0.0
    %657 = vmatpush1.msra.mxu0 0.0
    %658 = vmatprep.subr.mxu0 0.0
    %659 = vmatpush1.msra.mxu0 0.0
    %660 = vmatprep.subr.mxu0 0.0
    %661 = vmatpush1.msra.mxu0 0.0
    %662 = vmatprep.subr.mxu0 0.0
    %663 = vmatpush1.msra.mxu0 0.0
    %664 = vmatprep.subr.mxu0 0.0
    %665 = vmatpush1.msra.mxu0 0.0
    %666 = vmatprep.subr.mxu0 0.0
    %667 = vmatpush1.msra.mxu0 0.0
    %668 = vmatprep.subr.mxu0 0.0
    %669 = vmatpush1.msra.mxu0 0.0
    %670 = vmatprep.subr.mxu0 0.0
    %671 = vmatpush1.msra.mxu0 0.0
    %672 = vmatprep.subr.mxu0 0.0
    %673 = vmatpush1.msra.mxu0 0.0
    %674 = vmatprep.subr.mxu0 0.0
    %675 = vmatpush1.msra.mxu0 0.0
    %676 = vmatprep.subr.mxu0 0.0
    %677 = vmatpush1.msra.mxu0 0.0
    %678 = vmatprep.subr.mxu0 0.0
    %679 = vmatpush1.msra.mxu0 0.0
    %680 = vmatprep.subr.mxu0 0.0
    %681 = vmatpush1.msra.mxu0 0.0
    %682 = vmatprep.subr.mxu0 0.0
    %683 = vmatpush1.msra.mxu0 0.0
    %684 = vmatprep.subr.mxu0 0.0
    %685 = vmatpush1.msra.mxu0 0.0
    %686 = vmatprep.subr.mxu0 0.0
    %687 = vmatpush1.msra.mxu0 0.0
    %688 = vmatprep.subr.mxu0 0.0
    %689 = vmatpush1.msra.mxu0 0.0
    %690 = vmatprep.subr.mxu0 0.0
    %691 = vmatpush1.msra.mxu0 0.0
    %692 = vmatprep.subr.mxu0 0.0
    %693 = vmatpush1.msra.mxu0 0.0
    %694 = vmatprep.mubr.f32.mxu0 0.0
    %695 = vmatmul.mubr.f32.gmra.mrb[0].mxu0 %v628
    %v696 = vpop.f32.mrb[0].mxu0
    %v697 = vadd.f32 0.0, %v696
    %v698 = vpop.f32.mrb[0].mxu0
    %699 = vdwg.mxu0
    %v700 = vadd.f32 %v626, %v697
    %v701 = vtanh.pop %v700
    %v702 = vmul.f32 %v622, 0.9
    %v703 = vmul.f32 %v701, 0.1
    %v704 = vadd.f32 %v702, %v703
    %s705 = scalar_lea.vmem [#allocation8], 14
    %706 = vst.msk [vmem:[%s705] sm:$0x3] %vm131, %v704
    %707 = vst.msk [vmem:[#allocation2] sm:$0x3] %vm131, %v704
    // Predicated region
    $region22: #{tpu_custom_call.1} parent=1 // pred_check
      _
    $region23: #{tpu_custom_call.1} parent=1 // pred_check_branch
      %709 = sbr.rel (0) target = $region25
    $region24: #{tpu_custom_call.1} parent=1 // pred_region
      %s711 = ssub.s32 256, 256
      %712 = vsyncadd [#allocation5], %s711
      %s713 = sshll.u32 [#allocation8], 4
      %s714 = int_to_ptr.vmem [resolvable:$true] %s713
      %719 = dma.vmem_to_hbm [thread:$0]  %s714, 256, %s2, [#allocation5], 32, 32, 2
    $region25: #{tpu_custom_call.1} parent=1 // pred_fallthru
      _
    // Predicated region
    $region26: #{tpu_custom_call.1} parent=1 // pred_check
      _
    $region27: #{tpu_custom_call.1} parent=1 // pred_check_branch
      %721 = sbr.rel (0) target = $region29
    $region28: #{tpu_custom_call.1} parent=1 // pred_region
      %722 = dma.done [#allocation5], 256
    $region29: #{tpu_custom_call.1} parent=1 // pred_fallthru
      _
    %723 = vsyncpa [#allocation4], 1
    %724 = vsyncpa [#allocation7], 1
    %725 = vsyncpa [#allocation5], 1

</llo_original>
